<compile_context>
chip_gen: v7x
topology: tpu7x:2x2x1
jax: 0.10.0
libtpu: 0.0.40
codegen_flags: <defaults>
</compile_context>

<pallas_src>
import functools
from collections import defaultdict

import numpy as np

import jax
import jax.numpy as jnp
from jax import lax
from jax.experimental import pallas as pl
from jax.experimental.pallas import tpu as pltpu


_EPS_COS = 1e-8        # F.cosine_similarity clamps each norm to eps individually
_EPS_NORM_SQ = 1e-12   # guards all-zero token rows (incl. lane-padded style rows)
_MXU_DTYPE = jnp.bfloat16   # MXU operand dtype (accumulation stays f32)
_OUT_LANES = 128            # lane-dense scalar output tile width

_CLIP_FIELDS = ('trg_encoded', 'src_encoded', 'trg_domain_emb', 'src_domain_emb',
                'trg_tokens', 'trg_tokens_style')


# ----------------------------------------------------------------------------
# Pallas kernel: all three CLIP losses for one encoder (one grid step = one encoder)
# ----------------------------------------------------------------------------

def _clip_fused_kernel(trg_enc_ref, src_enc_ref, enc_cat_ref, trg_dom_ref,
                       src_dom_ref, tok_ref, sty_ref, out_ref, *, m_valid):
    """Per-encoder fused CLIP losses.

    In-kernel shapes (leading encoder dim squeezed by BlockSpec):
      trg_enc/src_enc: (B, D)     enc_cat: (2B, D)   (wrapper-side concat, XLA-free)
      trg_dom: (Tt, D)  src_dom: (Ts, D)
      tok: (B, N, D)    sty: (1, Mp, D) zero-padded beyond `m_valid` style rows
      out: (8, 128) f32 tile; sublane 0 lanes 0..2 = [direction, dom_div, difa_local]
    """
    f32 = jnp.float32
    trg = trg_enc_ref[...].astype(f32)                 # (B, D)
    src = src_enc_ref[...].astype(f32)
    B = trg.shape[0]

    # ---- direction loss ----------------------------------------------------
    edit_im = trg - src                                                  # (B, D)
    # TODO(synk): exact torch semantics for trg_domain_emb with >1 row would give a
    # per-row edit direction; this matches the module for the usual (1, D) case.
    edit_dom = (jnp.mean(trg_dom_ref[...].astype(f32), axis=0, keepdims=True)
                - jnp.mean(src_dom_ref[...].astype(f32), axis=0, keepdims=True))
    dot = jnp.sum(edit_im * edit_dom, axis=-1, keepdims=True)            # (B, 1)
    sx = jnp.sum(edit_im * edit_im, axis=-1, keepdims=True)              # (B, 1)
    sy = jnp.sum(edit_dom * edit_dom, axis=-1, keepdims=True)            # (1, 1)
    cos = (dot
           * lax.rsqrt(jnp.maximum(sx, _EPS_COS * _EPS_COS))             # EUP slot
           * lax.rsqrt(jnp.maximum(sy, _EPS_COS * _EPS_COS)))
    dir_loss = 1.0 - jnp.mean(cos)

    # ---- dom_div: L1(trg@trg.T, src@src.T), single fused MXU gram ----------
    dims = (((1,), (1,)), ((), ()))                    # contract feature axis
    cat = enc_cat_ref[...].astype(_MXU_DTYPE)          # (2B, D) bf16 operands
    gram = lax.dot_general(cat, cat, dims, preferred_element_type=f32)   # (2B, 2B)
    dom_loss = jnp.mean(jnp.abs(gram[:B, :B] - gram[B:, B:]))

    # ---- difa_local ----------------------------------------------------------
    tok = tok_ref[...].astype(f32)                     # (B, N, D)
    sty = sty_ref[...].astype(f32)                     # (1, Mp, D)
    Bb, N, D = tok.shape
    Mp = sty.shape[1]
    tok_n = (tok * lax.rsqrt(jnp.maximum(jnp.sum(tok * tok, axis=-1, keepdims=True),
                                         _EPS_NORM_SQ))
             ).astype(_MXU_DTYPE).reshape(Bb * N, D)
    sty_n = (sty * lax.rsqrt(jnp.maximum(jnp.sum(sty * sty, axis=-1, keepdims=True),
                                         _EPS_NORM_SQ))
             ).astype(_MXU_DTYPE).reshape(Mp, D)
    # single collapsed (B*N, D) @ (Mp, D)^T matmul (style tokens shared across batch)
    attn = lax.dot_general(tok_n, sty_n, dims, preferred_element_type=f32)  # (B*N, Mp)

    lane = lax.broadcasted_iota(jnp.int32, (Bb * N, Mp), 1)
    masked = jnp.where(lane < m_valid, attn, -jnp.inf)       # mask lane padding
    # cost = 1 - attn; min(cost) == 1 - max(attn): never materialize cost.
    row_max = jnp.max(masked, axis=1, keepdims=True)                      # (B*N, 1)
    row_mean = jnp.mean(row_max.reshape(Bb, N), axis=1, keepdims=True)    # (B, 1)
    # TODO(synk): at production B*N, compute the column max without the (B,N,Mp)
    # reshape (tile over batch with a 'parallel' grid dim instead).
    col_max = jnp.max(masked.reshape(Bb, N, Mp), axis=1)                  # (B, Mp)
    col_lane = lax.broadcasted_iota(jnp.int32, (Bb, Mp), 1)
    col_mean = (jnp.sum(jnp.where(col_lane < m_valid, col_max, 0.0),
                        axis=1, keepdims=True) * (1.0 / float(m_valid)))  # (B, 1)
    difa_loss = jnp.mean(1.0 - jnp.minimum(row_mean, col_mean))

    # ---- lane-dense scalar output tile (unmasked full store) ----------------
    sub_i = lax.broadcasted_iota(jnp.int32, (8, _OUT_LANES), 0)
    lane_i = lax.broadcasted_iota(jnp.int32, (8, _OUT_LANES), 1)
    tile = jnp.where((sub_i == 0) & (lane_i == 0), dir_loss,
           jnp.where((sub_i == 0) & (lane_i == 1), dom_loss,
           jnp.where((sub_i == 0) & (lane_i == 2), difa_loss, 0.0)))
    out_ref[...] = tile


# ----------------------------------------------------------------------------
# Jitted wrappers
# ----------------------------------------------------------------------------

@jax.jit
def _clip_losses_stacked(trg_enc, src_enc, trg_dom, src_dom, tok, sty):
    """All CLIP losses for E stacked encoders in ONE gridded pallas_call.

    Args (all with a leading encoder axis E):
      trg_enc/src_enc: (E, B, D)  trg_dom: (E, Tt, D)  src_dom: (E, Ts, D)
      tok: (E, B, N, D)           sty: (E, 1, M, D)
    Returns (E, 3) f32: [direction, dom_div, difa_local] per encoder.
    """
    E, B, D = trg_enc.shape
    Tt = trg_dom.shape[1]
    Ts = src_dom.shape[1]
    N = tok.shape[2]
    M = sty.shape[2]
    Mp = max(_OUT_LANES, -(-M // _OUT_LANES) * _OUT_LANES)     # lane-pad style tokens
    if Mp != M:
        sty = jnp.pad(sty, ((0, 0), (0, 0), (0, Mp - M), (0, 0)))
    # Wrapper-side concat (free in XLA) so the kernel never concatenates along
    # unaligned sublanes; duplicate DMA bytes are negligible vs. the token tensors.
    enc_cat = jnp.concatenate([trg_enc, src_enc], axis=1)      # (E, 2B, D)

    inputs = (trg_enc, src_enc, enc_cat, trg_dom, src_dom, tok, sty)
    in_specs = [
        pl.BlockSpec((None, B, D), lambda e: (e, 0, 0)),
        pl.BlockSpec((None, B, D), lambda e: (e, 0, 0)),
        pl.BlockSpec((None, 2 * B, D), lambda e: (e, 0, 0)),
        pl.BlockSpec((None, Tt, D), lambda e: (e, 0, 0)),
        pl.BlockSpec((None, Ts, D), lambda e: (e, 0, 0)),
        pl.BlockSpec((None, B, N, D), lambda e: (e, 0, 0, 0)),
        pl.BlockSpec((None, 1, Mp, D), lambda e: (e, 0, 0, 0)),
    ]
    out_spec = pl.BlockSpec((None, 8, _OUT_LANES), lambda e: (e, 0, 0))

    # VMEM budget: per-encoder blocks are double-buffered + f32 temporaries.
    # TODO(synk): for production CLIP token counts also tile difa_local over B
    # (extra 'parallel' grid dim) so this stays under v7x's 64 MiB VMEM.
    block_bytes = sum(int(x.size // E) * x.dtype.itemsize for x in inputs)
    vmem_limit = int(min(max(32 << 20, 8 * block_bytes + (4 << 20)), 64 << 20))

    flops = int(E * (2 * (2 * B) * (2 * B) * D          # fused gram
                     + 2 * (B * N) * Mp * D             # difa_local attn
                     + 8 * B * D))                       # direction VPU work
    transcendentals = int(E * (B * N + Mp + B + 1))      # rsqrt calls
    bytes_accessed = int(sum(x.size * x.dtype.itemsize for x in inputs)
                         + E * 8 * _OUT_LANES * 4)

    out = pl.pallas_call(
        functools.partial(_clip_fused_kernel, m_valid=M),
        out_shape=jax.ShapeDtypeStruct((E, 8, _OUT_LANES), jnp.float32),
        grid=(E,),
        in_specs=in_specs,
        out_specs=out_spec,
        compiler_params=pltpu.CompilerParams(
            dimension_semantics=("parallel",),
            vmem_limit_bytes=vmem_limit),
        cost_estimate=pl.CostEstimate(flops=flops,
                                      transcendentals=transcendentals,
                                      bytes_accessed=bytes_accessed),
    )(*inputs)
    return out[:, 0, :3]        # (E, 3): [direction, dom_div, difa_local]


@functools.partial(jax.jit, static_argnames=("window", "alpha", "total_iter"))
def _psp_step(src_q, tgt_q, count, pos, tgt, src, iters, *,
              window, alpha, total_iter):
    """PSPLoss 'dynamic'/'mean' step with a fixed-size circular queue.

    The masked L1 is plain jnp (fused by XLA into the surrounding ops) — no Pallas
    launch for a ~KB-scale op.  Returns (loss, new_src_q, new_tgt_q, count, pos).
    """
    f32 = jnp.float32
    src_vec = jnp.mean(src.astype(f32), axis=0)          # (K,)
    tgt_vec = jnp.mean(tgt.astype(f32), axis=0)
    idx = jnp.where(count < window, count, pos)
    src_q = src_q.at[idx].set(src_vec)
    tgt_q = tgt_q.at[idx].set(tgt_vec)
    new_count = jnp.minimum(count + 1, window)
    new_pos = jnp.where(count < window, pos, (pos + 1) % window)

    valid = (jnp.arange(window) < new_count)[:, None].astype(f32)
    delta_w = jnp.sum((tgt_q - src_q) * valid, axis=0) / new_count.astype(f32)

    K = delta_w.shape[0]
    k_sel = int(alpha * K)
    order = jnp.argsort(jnp.abs(delta_w))                # smallest |delta_w| selected
    cond = jnp.zeros((K,), f32).at[order[:k_sel]].set(1.0)[None, :]

    reg_w = jnp.maximum(0.0, (iters - window) / float(total_iter - window))
    masked_l1 = jnp.mean(jnp.abs(cond * (tgt.astype(f32) - src.astype(f32))))
    return reg_w * masked_l1, src_q, tgt_q, new_count, new_pos


# ----------------------------------------------------------------------------
# ComposedLoss equivalent
# ----------------------------------------------------------------------------

class OptimizationSetup:
    loss_funcs = ['direction', 'difa_local', 'dom_div', 'difa_w']
    loss_coefs = [1.0, 0.5, 0.25, 0.1]
    num_keep_first = 2           # keep first num_keep_first * 512 latent channels
    psp_alpha = 0.6


class ComposedLossPallas:
    clip_losses = ('direction', 'difa_local', 'dom_div')
    _clip_slot = {'direction': 0, 'dom_div': 1, 'difa_local': 2}

    def __init__(self, config):
        self.config = config
        self.loss_funcs = config.loss_funcs
        self.coefs = config.loss_coefs
        self.sliding_window_size = 50
        self.psp_alpha = config.psp_alpha
        self.num_keep_first = config.num_keep_first
        self.total_iter = 200    # PSPLoss.iter is set by the trainer in torch
        self._src_queue = None
        self._tgt_queue = None
        self._queue_count = None
        self._queue_pos = None

    # --- PSP "difa_w" -------------------------------------------------------
    def _difa_w(self, batch):
        inv = batch['inv_data']
        bsz = inv['trg_latents'].shape[0]
        keep = self.num_keep_first * 512
        tgt = inv['trg_latents'].reshape(bsz, -1)[:, :keep]
        src = inv['src_latents'].reshape(bsz, -1)[:, :keep]
        iters = jnp.asarray(inv['iters'], jnp.float32)

        if self._src_queue is None:
            K = tgt.shape[1]
            self._src_queue = jnp.zeros((self.sliding_window_size, K), jnp.float32)
            self._tgt_queue = jnp.zeros((self.sliding_window_size, K), jnp.float32)
            self._queue_count = jnp.zeros((), jnp.int32)
            self._queue_pos = jnp.zeros((), jnp.int32)

        (loss, self._src_queue, self._tgt_queue,
         self._queue_count, self._queue_pos) = _psp_step(
            self._src_queue, self._tgt_queue, self._queue_count, self._queue_pos,
            tgt, src, iters,
            window=self.sliding_window_size, alpha=self.psp_alpha,
            total_iter=self.total_iter)
        return loss

    # --- CLIP losses: group encoders by shape, one gridded call per group ----
    def _clip_results(self, clip_data):
        groups = defaultdict(list)
        for key, cb in clip_data.items():
            sig = tuple(tuple(cb[f].shape) for f in _CLIP_FIELDS)
            groups[sig].append(key)
        results = {}
        for keys in groups.values():
            stacked = [jnp.stack([clip_data[k][f] for k in keys], axis=0)
                       for f in _CLIP_FIELDS]
            vals = _clip_losses_stacked(*stacked)          # (E, 3)
            for i, k in enumerate(keys):
                results[k] = vals[i]
        return results

    # --- forward --------------------------------------------------------------
    def forward(self, batch):
        losses = {'final': jnp.float32(0.0)}

        clip_results = {}
        if any(n in self.clip_losses for n in self.loss_funcs) and batch.get('clip_data'):
            clip_results = self._clip_results(batch['clip_data'])

        for name, coef in zip(self.loss_funcs, self.coefs):
            if name in self.clip_losses:
                for key in batch['clip_data']:
                    log_key = key.replace('/', '-')
                    val = clip_results[key][self._clip_slot[name]]
                    losses[f'{name}_{log_key}'] = val
                    losses['final'] = losses['final'] + val * coef
            elif name in ('difa_w', 'scc'):
                val = self._difa_w(batch)
                losses[name] = val
                losses['final'] = losses['final'] + val * coef
            else:
                # TODO(synk): id / ref_id / face_div / discr_feat / rec_perc /
                # perc_div / grad_style need pretrained ArcFace / StyleGAN-D /
                # LPIPS backbones — not translatable to a standalone Pallas kernel.
                raise ValueError(name)
        return losses


# ----------------------------------------------------------------------------
# Pure-JAX f32 reference (matches the torch module; for tolerance checking)
# ----------------------------------------------------------------------------

def _ref_clip_losses(cb):
    f32 = jnp.float32
    trg = cb['trg_encoded'].astype(f32)
    src = cb['src_encoded'].astype(f32)
    edit_im = trg - src
    edit_dom = jnp.mean(cb['trg_domain_emb'].astype(f32)[:, None, :]
                        - cb['src_domain_emb'].astype(f32)[None, :, :], axis=1)
    nx = jnp.maximum(jnp.linalg.norm(edit_im, axis=-1), 1e-8)
    ny = jnp.maximum(jnp.linalg.norm(edit_dom, axis=-1), 1e-8)
    cos = jnp.sum(edit_im * edit_dom, axis=-1) / (nx * ny)
    direction = jnp.mean(1.0 - cos)

    dom_div = jnp.mean(jnp.abs(trg @ trg.T - src @ src.T))

    tok = cb['trg_tokens'].astype(f32)
    sty = jnp.broadcast_to(cb['trg_tokens_style'].astype(f32),
                           (tok.shape[0],) + cb['trg_tokens_style'].shape[1:])
    tok = tok / jnp.linalg.norm(tok, axis=-1, keepdims=True)
    sty = sty / jnp.linalg.norm(sty, axis=-1, keepdims=True)
    cost = 1.0 - jnp.einsum('bnd,bmd->bnm', tok, sty)
    row = cost.min(axis=2).mean(axis=1)
    col = cost.min(axis=1).mean(axis=1)
    difa = jnp.mean(jnp.maximum(row, col))
    return direction, dom_div, difa


def _ref_psp(batch, num_keep_first, alpha, window, total_iter):
    inv = batch['inv_data']
    bsz = inv['trg_latents'].shape[0]
    keep = num_keep_first * 512
    tgt = inv['trg_latents'].reshape(bsz, -1)[:, :keep].astype(jnp.float32)
    src = inv['src_latents'].reshape(bsz, -1)[:, :keep].astype(jnp.float32)
    delta_w = jnp.mean(tgt, axis=0) - jnp.mean(src, axis=0)     # first call: queue size 1
    K = delta_w.shape[0]
    order = jnp.argsort(jnp.abs(delta_w))
    cond = jnp.zeros((K,), jnp.float32).at[order[:int(alpha * K)]].set(1.0)[None, :]
    reg = max(0.0, (float(inv['iters']) - window) / (total_iter - window))
    return reg * jnp.mean(jnp.abs(cond * tgt - cond * src))


# ----------------------------------------------------------------------------
if __name__ == "__main__":
    key = jax.random.PRNGKey(0)
    ks = jax.random.split(key, 4)

    B, D, N, M, T = 2, 32, 8, 8, 4     # batch, embed dim, tokens, style tokens, templates
    L = 4                              # latent rows (>= num_keep_first)

    def make_clip(k):
        kk = jax.random.split(k, 7)
        return {
            'trg_encoded': jax.random.normal(kk[0], (B, D), jnp.float32),
            'src_encoded': jax.random.normal(kk[1], (B, D), jnp.float32),
            'trg_domain_emb': jax.random.normal(kk[2], (1, D), jnp.float32),
            'src_domain_emb': jax.random.normal(kk[3], (T, D), jnp.float32),
            'trg_tokens': jax.random.normal(kk[4], (B, N, D), jnp.float32),
            'src_tokens': jax.random.normal(kk[5], (B, N, D), jnp.float32),
            'trg_tokens_style': jax.random.normal(kk[6], (1, M, D), jnp.float32),
        }

    batch = {
        'clip_data': {'ViT-B/32': make_clip(ks[0]), 'ViT-B/16': make_clip(ks[1])},
        'inv_data': {
            'trg_latents': jax.random.normal(ks[2], (B, L, 512), jnp.float32),
            'src_latents': jax.random.normal(ks[3], (B, L, 512), jnp.float32),
            'iters': 100,
        },
    }

    cfg = OptimizationSetup()
    loss_module = ComposedLossPallas(cfg)
    losses = loss_module.forward(batch)
    jax.block_until_ready(losses['final'])

    # Tolerance check vs. f32 reference (bf16 MXU operands => loose tolerance).
    ok = True
    for enc_key, cb in batch['clip_data'].items():
        r_dir, r_dom, r_difa = _ref_clip_losses(cb)
        refs = {'direction': r_dir, 'dom_div': r_dom, 'difa_local': r_difa}
        lk = enc_key.replace('/', '-')
        for name, ref_val in refs.items():
            got = float(losses[f'{name}_{lk}'])
            if not np.allclose(got, float(ref_val), rtol=5e-2, atol=5e-2):
                ok = False
                print(f"MISMATCH {name}_{lk}: got {got} ref {float(ref_val)}")
    ref_psp = _ref_psp(batch, cfg.num_keep_first, cfg.psp_alpha, 50, 200)
    if not np.allclose(float(losses['difa_w']), float(ref_psp), rtol=1e-4, atol=1e-5):
        ok = False
        print(f"MISMATCH difa_w: got {float(losses['difa_w'])} ref {float(ref_psp)}")

    if ok:
        print("KERNEL_OK")
</pallas_src>

<mosaic_0001>
module attributes {stable_mosaic.version = 11 : i64} {
  func.func @_clip_fused_kernel(%arg0: i32, %arg1: memref<1x2x32xf32, #tpu.memory_space<vmem>>, %arg2: memref<1x2x32xf32, #tpu.memory_space<vmem>>, %arg3: memref<1x4x32xf32, #tpu.memory_space<vmem>>, %arg4: memref<1x1x32xf32, #tpu.memory_space<vmem>>, %arg5: memref<1x4x32xf32, #tpu.memory_space<vmem>>, %arg6: memref<1x2x8x32xf32, #tpu.memory_space<vmem>>, %arg7: memref<1x1x128x32xf32, #tpu.memory_space<vmem>>, %arg8: memref<1x8x128xf32, #tpu.memory_space<vmem>>) attributes {dimension_semantics = [#tpu.dimension_semantics<parallel>], iteration_bounds = array<i64: 2>, scalar_prefetch = 0 : i64, scratch_operands = 0 : i64, tpu.core_type = #tpu.core_type<tc>, window_params = [{transform_indices = @transform_0, window_bounds = array<i64: 1, 2, 32>}, {transform_indices = @transform_1, window_bounds = array<i64: 1, 2, 32>}, {transform_indices = @transform_2, window_bounds = array<i64: 1, 4, 32>}, {transform_indices = @transform_3, window_bounds = array<i64: 1, 1, 32>}, {transform_indices = @transform_4, window_bounds = array<i64: 1, 4, 32>}, {transform_indices = @transform_5, window_bounds = array<i64: 1, 2, 8, 32>}, {transform_indices = @transform_6, window_bounds = array<i64: 1, 1, 128, 32>}, {transform_indices = @transform_7, window_bounds = array<i64: 1, 8, 128>}]} {
    %c0 = arith.constant 0 : index
    %c0_0 = arith.constant 0 : index
    %c0_1 = arith.constant 0 : index
    %0 = vector.load %arg1[%c0, %c0_0, %c0_1] : memref<1x2x32xf32, #tpu.memory_space<vmem>>, vector<1x2x32xf32>
    %1 = vector.shape_cast %0 : vector<1x2x32xf32> to vector<2x32xf32>
    %c0_2 = arith.constant 0 : index
    %c0_3 = arith.constant 0 : index
    %c0_4 = arith.constant 0 : index
    %2 = vector.load %arg2[%c0_2, %c0_3, %c0_4] : memref<1x2x32xf32, #tpu.memory_space<vmem>>, vector<1x2x32xf32>
    %3 = vector.shape_cast %2 : vector<1x2x32xf32> to vector<2x32xf32>
    %4 = arith.subf %1, %3 : vector<2x32xf32>
    %c0_5 = arith.constant 0 : index
    %c0_6 = arith.constant 0 : index
    %c0_7 = arith.constant 0 : index
    %5 = vector.load %arg4[%c0_5, %c0_6, %c0_7] : memref<1x1x32xf32, #tpu.memory_space<vmem>>, vector<1x1x32xf32>
    %6 = vector.shape_cast %5 : vector<1x1x32xf32> to vector<1x32xf32>
    %cst = arith.constant dense<0.000000e+00> : vector<32xf32>
    %7 = vector.multi_reduction <add>, %6, %cst [0] : vector<1x32xf32> to vector<32xf32>
    %8 = vector.shape_cast %7 : vector<32xf32> to vector<1x32xf32>
    %cst_8 = arith.constant 1.000000e+00 : f32
    %9 = vector.broadcast %cst_8 : f32 to vector<1x32xf32>
    %10 = arith.divf %8, %9 : vector<1x32xf32>
    %c0_9 = arith.constant 0 : index
    %c0_10 = arith.constant 0 : index
    %c0_11 = arith.constant 0 : index
    %11 = vector.load %arg5[%c0_9, %c0_10, %c0_11] : memref<1x4x32xf32, #tpu.memory_space<vmem>>, vector<1x4x32xf32>
    %12 = vector.shape_cast %11 : vector<1x4x32xf32> to vector<4x32xf32>
    %cst_12 = arith.constant dense<0.000000e+00> : vector<32xf32>
    %13 = vector.multi_reduction <add>, %12, %cst_12 [0] : vector<4x32xf32> to vector<32xf32>
    %14 = vector.shape_cast %13 : vector<32xf32> to vector<1x32xf32>
    %cst_13 = arith.constant 4.000000e+00 : f32
    %15 = vector.broadcast %cst_13 : f32 to vector<1x32xf32>
    %16 = arith.divf %14, %15 : vector<1x32xf32>
    %17 = arith.subf %10, %16 : vector<1x32xf32>
    %18 = vector.broadcast %17 : vector<1x32xf32> to vector<2x32xf32>
    %19 = arith.mulf %4, %18 : vector<2x32xf32>
    %cst_14 = arith.constant dense<0.000000e+00> : vector<2xf32>
    %20 = vector.multi_reduction <add>, %19, %cst_14 [1] : vector<2x32xf32> to vector<2xf32>
    %21 = vector.shape_cast %20 : vector<2xf32> to vector<2x1xf32>
    %22 = arith.mulf %4, %4 : vector<2x32xf32>
    %cst_15 = arith.constant dense<0.000000e+00> : vector<2xf32>
    %23 = vector.multi_reduction <add>, %22, %cst_15 [1] : vector<2x32xf32> to vector<2xf32>
    %24 = vector.shape_cast %23 : vector<2xf32> to vector<2x1xf32>
    %25 = arith.mulf %17, %17 : vector<1x32xf32>
    %cst_16 = arith.constant dense<0.000000e+00> : vector<1xf32>
    %26 = vector.multi_reduction <add>, %25, %cst_16 [1] : vector<1x32xf32> to vector<1xf32>
    %27 = vector.shape_cast %26 : vector<1xf32> to vector<1x1xf32>
    %cst_17 = arith.constant 1.000000e-16 : f32
    %28 = vector.broadcast %cst_17 : f32 to vector<2x1xf32>
    %29 = arith.maximumf %24, %28 : vector<2x1xf32>
    %30 = math.rsqrt %29 : vector<2x1xf32>
    %31 = arith.mulf %21, %30 : vector<2x1xf32>
    %cst_18 = arith.constant 1.000000e-16 : f32
    %32 = vector.broadcast %cst_18 : f32 to vector<1x1xf32>
    %33 = arith.maximumf %27, %32 : vector<1x1xf32>
    %34 = math.rsqrt %33 : vector<1x1xf32>
    %35 = vector.broadcast %34 : vector<1x1xf32> to vector<2x1xf32>
    %36 = arith.mulf %31, %35 : vector<2x1xf32>
    %37 = vector.shape_cast %36 : vector<2x1xf32> to vector<1x2x1xf32>
    %cst_19 = arith.constant dense<0.000000e+00> : vector<1xf32>
    %38 = vector.multi_reduction <add>, %37, %cst_19 [1, 2] : vector<1x2x1xf32> to vector<1xf32>
    %39 = vector.shape_cast %38 : vector<1xf32> to vector<1x1x1xf32>
    %40 = vector.extract %39[0, 0, 0] : f32 from vector<1x1x1xf32>
    %cst_20 = arith.constant 2.000000e+00 : f32
    %41 = arith.divf %40, %cst_20 : f32
    %cst_21 = arith.constant 1.000000e+00 : f32
    %42 = arith.subf %cst_21, %41 : f32
    %c0_22 = arith.constant 0 : index
    %c0_23 = arith.constant 0 : index
    %c0_24 = arith.constant 0 : index
    %43 = vector.load %arg3[%c0_22, %c0_23, %c0_24] : memref<1x4x32xf32, #tpu.memory_space<vmem>>, vector<1x4x32xf32>
    %44 = vector.shape_cast %43 : vector<1x4x32xf32> to vector<4x32xf32>
    %45 = arith.truncf %44 : vector<4x32xf32> to vector<4x32xbf16>
    %cst_25 = arith.constant dense<0.000000e+00> : vector<4x4xf32>
    %46 = tpu.matmul %45, %45, %cst_25 {dimension_numbers = #tpu.dot_dimension_numbers<[1], [1], [0], [0], [0, 0, 1, 0], [], []>} : vector<4x32xbf16>, vector<4x32xbf16>, vector<4x4xf32> -> vector<4x4xf32>
    %47 = vector.extract_strided_slice %46 {offsets = [0, 0], sizes = [2, 2], strides = [1, 1]} : vector<4x4xf32> to vector<2x2xf32>
    %48 = vector.extract_strided_slice %46 {offsets = [2, 2], sizes = [2, 2], strides = [1, 1]} : vector<4x4xf32> to vector<2x2xf32>
    %49 = arith.subf %47, %48 : vector<2x2xf32>
    %50 = math.absf %49 : vector<2x2xf32>
    %51 = vector.shape_cast %50 : vector<2x2xf32> to vector<1x2x2xf32>
    %cst_26 = arith.constant dense<0.000000e+00> : vector<1xf32>
    %52 = vector.multi_reduction <add>, %51, %cst_26 [1, 2] : vector<1x2x2xf32> to vector<1xf32>
    %53 = vector.shape_cast %52 : vector<1xf32> to vector<1x1x1xf32>
    %54 = vector.extract %53[0, 0, 0] : f32 from vector<1x1x1xf32>
    %cst_27 = arith.constant 4.000000e+00 : f32
    %55 = arith.divf %54, %cst_27 : f32
    %c0_28 = arith.constant 0 : index
    %c0_29 = arith.constant 0 : index
    %c0_30 = arith.constant 0 : index
    %c0_31 = arith.constant 0 : index
    %56 = vector.load %arg6[%c0_28, %c0_29, %c0_30, %c0_31] : memref<1x2x8x32xf32, #tpu.memory_space<vmem>>, vector<1x2x8x32xf32>
    %57 = vector.shape_cast %56 : vector<1x2x8x32xf32> to vector<2x8x32xf32>
    %c0_32 = arith.constant 0 : index
    %c0_33 = arith.constant 0 : index
    %c0_34 = arith.constant 0 : index
    %c0_35 = arith.constant 0 : index
    %58 = vector.load %arg7[%c0_32, %c0_33, %c0_34, %c0_35] : memref<1x1x128x32xf32, #tpu.memory_space<vmem>>, vector<1x1x128x32xf32>
    %59 = vector.shape_cast %58 : vector<1x1x128x32xf32> to vector<1x128x32xf32>
    %60 = arith.mulf %57, %57 : vector<2x8x32xf32>
    %cst_36 = arith.constant dense<0.000000e+00> : vector<2x8xf32>
    %61 = vector.multi_reduction <add>, %60, %cst_36 [2] : vector<2x8x32xf32> to vector<2x8xf32>
    %62 = vector.shape_cast %61 : vector<2x8xf32> to vector<2x8x1xf32>
    %cst_37 = arith.constant 9.99999996E-13 : f32
    %63 = vector.broadcast %cst_37 : f32 to vector<2x8x1xf32>
    %64 = arith.maximumf %62, %63 : vector<2x8x1xf32>
    %65 = math.rsqrt %64 : vector<2x8x1xf32>
    %66 = vector.broadcast %65 : vector<2x8x1xf32> to vector<2x8x32xf32>
    %67 = arith.mulf %57, %66 : vector<2x8x32xf32>
    %68 = arith.truncf %67 : vector<2x8x32xf32> to vector<2x8x32xbf16>
    %69 = vector.shape_cast %68 : vector<2x8x32xbf16> to vector<16x32xbf16>
    %70 = arith.mulf %59, %59 : vector<1x128x32xf32>
    %cst_38 = arith.constant dense<0.000000e+00> : vector<1x128xf32>
    %71 = vector.multi_reduction <add>, %70, %cst_38 [2] : vector<1x128x32xf32> to vector<1x128xf32>
    %72 = vector.shape_cast %71 : vector<1x128xf32> to vector<1x128x1xf32>
    %cst_39 = arith.constant 9.99999996E-13 : f32
    %73 = vector.broadcast %cst_39 : f32 to vector<1x128x1xf32>
    %74 = arith.maximumf %72, %73 : vector<1x128x1xf32>
    %75 = math.rsqrt %74 : vector<1x128x1xf32>
    %76 = vector.broadcast %75 : vector<1x128x1xf32> to vector<1x128x32xf32>
    %77 = arith.mulf %59, %76 : vector<1x128x32xf32>
    %78 = arith.truncf %77 : vector<1x128x32xf32> to vector<1x128x32xbf16>
    %79 = vector.shape_cast %78 : vector<1x128x32xbf16> to vector<128x32xbf16>
    %cst_40 = arith.constant dense<0.000000e+00> : vector<16x128xf32>
    %80 = tpu.matmul %69, %79, %cst_40 {dimension_numbers = #tpu.dot_dimension_numbers<[1], [1], [0], [0], [0, 0, 1, 0], [], []>} : vector<16x32xbf16>, vector<128x32xbf16>, vector<16x128xf32> -> vector<16x128xf32>
    %81 = tpu.iota {dimensions = array<i32: 1>} : vector<16x128xi32>
    %c8_i32 = arith.constant 8 : i32
    %82 = vector.broadcast %c8_i32 : i32 to vector<16x128xi32>
    %83 = arith.cmpi slt, %81, %82 : vector<16x128xi32>
    %cst_41 = arith.constant 0xFF800000 : f32
    %84 = vector.broadcast %cst_41 : f32 to vector<16x128xf32>
    %85 = arith.select %83, %80, %84 : vector<16x128xi1>, vector<16x128xf32>
    %cst_42 = arith.constant dense<0xFF800000> : vector<16xf32>
    %86 = vector.multi_reduction <maximumf>, %85, %cst_42 [1] : vector<16x128xf32> to vector<16xf32>
    %87 = vector.shape_cast %86 : vector<16xf32> to vector<16x1xf32>
    %88 = vector.shape_cast %87 : vector<16x1xf32> to vector<2x8xf32>
    %cst_43 = arith.constant dense<0.000000e+00> : vector<2xf32>
    %89 = vector.multi_reduction <add>, %88, %cst_43 [1] : vector<2x8xf32> to vector<2xf32>
    %90 = vector.shape_cast %89 : vector<2xf32> to vector<2x1xf32>
    %cst_44 = arith.constant 8.000000e+00 : f32
    %91 = vector.broadcast %cst_44 : f32 to vector<2x1xf32>
    %92 = arith.divf %90, %91 : vector<2x1xf32>
    %93 = vector.shape_cast %85 : vector<16x128xf32> to vector<2x8x128xf32>
    %cst_45 = arith.constant dense<0xFF800000> : vector<2x128xf32>
    %94 = vector.multi_reduction <maximumf>, %93, %cst_45 [1] : vector<2x8x128xf32> to vector<2x128xf32>
    %95 = tpu.iota {dimensions = array<i32: 1>} : vector<2x128xi32>
    %c8_i32_46 = arith.constant 8 : i32
    %96 = vector.broadcast %c8_i32_46 : i32 to vector<2x128xi32>
    %97 = arith.cmpi slt, %95, %96 : vector<2x128xi32>
    %cst_47 = arith.constant 0.000000e+00 : f32
    %98 = vector.broadcast %cst_47 : f32 to vector<2x128xf32>
    %99 = arith.select %97, %94, %98 : vector<2x128xi1>, vector<2x128xf32>
    %cst_48 = arith.constant dense<0.000000e+00> : vector<2xf32>
    %100 = vector.multi_reduction <add>, %99, %cst_48 [1] : vector<2x128xf32> to vector<2xf32>
    %101 = vector.shape_cast %100 : vector<2xf32> to vector<2x1xf32>
    %cst_49 = arith.constant 1.250000e-01 : f32
    %102 = vector.broadcast %cst_49 : f32 to vector<2x1xf32>
    %103 = arith.mulf %101, %102 : vector<2x1xf32>
    %104 = arith.minimumf %92, %103 : vector<2x1xf32>
    %cst_50 = arith.constant 1.000000e+00 : f32
    %105 = vector.broadcast %cst_50 : f32 to vector<2x1xf32>
    %106 = arith.subf %105, %104 : vector<2x1xf32>
    %107 = vector.shape_cast %106 : vector<2x1xf32> to vector<1x2x1xf32>
    %cst_51 = arith.constant dense<0.000000e+00> : vector<1xf32>
    %108 = vector.multi_reduction <add>, %107, %cst_51 [1, 2] : vector<1x2x1xf32> to vector<1xf32>
    %109 = vector.shape_cast %108 : vector<1xf32> to vector<1x1x1xf32>
    %110 = vector.extract %109[0, 0, 0] : f32 from vector<1x1x1xf32>
    %cst_52 = arith.constant 2.000000e+00 : f32
    %111 = arith.divf %110, %cst_52 : f32
    %112 = tpu.iota {dimensions = array<i32: 0>} : vector<8x128xi32>
    %113 = tpu.iota {dimensions = array<i32: 1>} : vector<8x128xi32>
    %c0_i32 = arith.constant 0 : i32
    %114 = vector.broadcast %c0_i32 : i32 to vector<8x128xi32>
    %115 = arith.cmpi eq, %112, %114 : vector<8x128xi32>
    %c0_i32_53 = arith.constant 0 : i32
    %116 = vector.broadcast %c0_i32_53 : i32 to vector<8x128xi32>
    %117 = arith.cmpi eq, %113, %116 : vector<8x128xi32>
    %118 = arith.andi %115, %117 : vector<8x128xi1>
    %c0_i32_54 = arith.constant 0 : i32
    %119 = vector.broadcast %c0_i32_54 : i32 to vector<8x128xi32>
    %120 = arith.cmpi eq, %112, %119 : vector<8x128xi32>
    %c1_i32 = arith.constant 1 : i32
    %121 = vector.broadcast %c1_i32 : i32 to vector<8x128xi32>
    %122 = arith.cmpi eq, %113, %121 : vector<8x128xi32>
    %123 = arith.andi %120, %122 : vector<8x128xi1>
    %c0_i32_55 = arith.constant 0 : i32
    %124 = vector.broadcast %c0_i32_55 : i32 to vector<8x128xi32>
    %125 = arith.cmpi eq, %112, %124 : vector<8x128xi32>
    %c2_i32 = arith.constant 2 : i32
    %126 = vector.broadcast %c2_i32 : i32 to vector<8x128xi32>
    %127 = arith.cmpi eq, %113, %126 : vector<8x128xi32>
    %128 = arith.andi %125, %127 : vector<8x128xi1>
    %cst_56 = arith.constant 0.000000e+00 : f32
    %129 = vector.broadcast %111 : f32 to vector<8x128xf32>
    %130 = vector.broadcast %cst_56 : f32 to vector<8x128xf32>
    %131 = arith.select %128, %129, %130 : vector<8x128xi1>, vector<8x128xf32>
    %132 = vector.broadcast %55 : f32 to vector<8x128xf32>
    %133 = arith.select %123, %132, %131 : vector<8x128xi1>, vector<8x128xf32>
    %134 = vector.broadcast %42 : f32 to vector<8x128xf32>
    %135 = arith.select %118, %134, %133 : vector<8x128xi1>, vector<8x128xf32>
    %c0_57 = arith.constant 0 : index
    %c0_58 = arith.constant 0 : index
    %c0_59 = arith.constant 0 : index
    %136 = vector.load %arg8[%c0_57, %c0_58, %c0_59] : memref<1x8x128xf32, #tpu.memory_space<vmem>>, vector<1x8x128xf32>
    %137 = vector.shape_cast %136 : vector<1x8x128xf32> to vector<8x128xf32>
    %138 = vector.shape_cast %135 : vector<8x128xf32> to vector<1x8x128xf32>
    tpu.vector_store %arg8[%c0_57, %c0_58, %c0_59], %138 {strides = array<i32>} : memref<1x8x128xf32, #tpu.memory_space<vmem>>, vector<1x8x128xf32>,
    return
  }
  func.func @transform_0(%arg0: i32) -> (i32, i32, i32) {
    %c0_i32 = arith.constant 0 : i32
    %c0_i32_0 = arith.constant 0 : i32
    %c0_i32_1 = arith.constant 0 : i32
    return %arg0, %c0_i32, %c0_i32_0 : i32, i32, i32
  }
  func.func @transform_1(%arg0: i32) -> (i32, i32, i32) {
    %c0_i32 = arith.constant 0 : i32
    %c0_i32_0 = arith.constant 0 : i32
    %c0_i32_1 = arith.constant 0 : i32
    return %arg0, %c0_i32, %c0_i32_0 : i32, i32, i32
  }
  func.func @transform_2(%arg0: i32) -> (i32, i32, i32) {
    %c0_i32 = arith.constant 0 : i32
    %c0_i32_0 = arith.constant 0 : i32
    %c0_i32_1 = arith.constant 0 : i32
    return %arg0, %c0_i32, %c0_i32_0 : i32, i32, i32
  }
  func.func @transform_3(%arg0: i32) -> (i32, i32, i32) {
    %c0_i32 = arith.constant 0 : i32
    %c0_i32_0 = arith.constant 0 : i32
    %c0_i32_1 = arith.constant 0 : i32
    return %arg0, %c0_i32, %c0_i32_0 : i32, i32, i32
  }
  func.func @transform_4(%arg0: i32) -> (i32, i32, i32) {
    %c0_i32 = arith.constant 0 : i32
    %c0_i32_0 = arith.constant 0 : i32
    %c0_i32_1 = arith.constant 0 : i32
    return %arg0, %c0_i32, %c0_i32_0 : i32, i32, i32
  }
  func.func @transform_5(%arg0: i32) -> (i32, i32, i32, i32) {
    %c0_i32 = arith.constant 0 : i32
    %c0_i32_0 = arith.constant 0 : i32
    %c0_i32_1 = arith.constant 0 : i32
    %c0_i32_2 = arith.constant 0 : i32
    return %arg0, %c0_i32, %c0_i32_0, %c0_i32_1 : i32, i32, i32, i32
  }
  func.func @transform_6(%arg0: i32) -> (i32, i32, i32, i32) {
    %c0_i32 = arith.constant 0 : i32
    %c0_i32_0 = arith.constant 0 : i32
    %c0_i32_1 = arith.constant 0 : i32
    %c0_i32_2 = arith.constant 0 : i32
    return %arg0, %c0_i32, %c0_i32_0, %c0_i32_1 : i32, i32, i32, i32
  }
  func.func @transform_7(%arg0: i32) -> (i32, i32, i32) {
    %c0_i32 = arith.constant 0 : i32
    %c0_i32_0 = arith.constant 0 : i32
    %c0_i32_1 = arith.constant 0 : i32
    return %arg0, %c0_i32, %c0_i32_0 : i32, i32, i32
  }
}

</mosaic_0001>

<llo_original>
// kernel: _clip_losses_stacked.1
$region0: #{_clip_losses_stacked.1}
  #allocation0 [shape = 'u32[]', space=smem, size = 0x4, offset = 0x4, fixed_abs, tag = 'smem constant byte address 0x4 - core index']
  #allocation1 [shape = 'u32[144,128]{1,0:T(1,128)}', space=vmem, size = 0x12000, scoped, tag = 'internal scratch']
  %s0 = inlined_call_operand.vmem [shape: f32[2,2,32], index: 0, kind: input, shape index: {}]
  %s1 = inlined_call_operand.vmem [shape: f32[2,2,32], index: 1, kind: input, shape index: {}]
  %s2 = inlined_call_operand.vmem [shape: f32[2,4,32], index: 2, kind: input, shape index: {}]
  %s3 = inlined_call_operand.vmem [shape: f32[2,1,32], index: 3, kind: input, shape index: {}]
  %s4 = inlined_call_operand.vmem [shape: f32[2,4,32], index: 4, kind: input, shape index: {}]
  %s5 = inlined_call_operand.vmem [shape: f32[2,2,8,32], index: 5, kind: input, shape index: {}]
  %s6 = inlined_call_operand.vmem [shape: f32[2,1,128,32], index: 6, kind: input, shape index: {}]
  %s7 = inlined_call_operand.vmem [shape: f32[2,8,128], index: 7, kind: output, shape index: {}]
  %s8 = sld [smem:[#allocation0]]
  $region61: #{_clip_losses_stacked.1} parent=0
    _
  %s10 = ssub.s32 1, %s8
  %s11 = scalar_select 0, %s10, %s8
  loop: start=0, step=1, limit=4
  $region2: #{_clip_losses_stacked.1} parent=0 // loop_pre_header
    _
  $region3: #{_clip_losses_stacked.1} parent=0 // loop_header
    %s13 = sphi 0, %s17
    %p14 = scmp.ge.s32.totalorder %s13, 4
    %s23 = sphi 0, %s25
    %s26 = sphi 0, %s23
    %s27 = sphi 0, %s26
    %s43 = sphi 0, %s27
    %s49 = sphi 0, %s51
    %s52 = sphi 0, %s49
    %s53 = sphi 0, %s52
    %s69 = sphi 0, %s53
    %s75 = sphi 0, %s77
    %s78 = sphi 0, %s75
    %s79 = sphi 0, %s78
    %s95 = sphi 0, %s79
    %s101 = sphi 0, %s103
    %s104 = sphi 0, %s101
    %s105 = sphi 0, %s104
    %s121 = sphi 0, %s105
    %s127 = sphi 0, %s129
    %s130 = sphi 0, %s127
    %s131 = sphi 0, %s130
    %s147 = sphi 0, %s131
    %s153 = sphi 0, %s155
    %s156 = sphi 0, %s153
    %s157 = sphi 0, %s156
    %s173 = sphi 0, %s157
    %s179 = sphi 0, %s181
    %s182 = sphi 0, %s179
    %s183 = sphi 0, %s182
    %s199 = sphi 0, %s183
    %s205 = sphi 0, %s207
    %s208 = sphi 0, %s205
    %s209 = sphi 0, %s208
    %s225 = sphi 0, %s209
  $region4: #{_clip_losses_stacked.1} parent=0 // loop_header_branch
    %16 = sbr.rel (%p14) target = $region8
  $region5: #{_clip_losses_stacked.1} parent=0 // loop_body
    %s18 = ssub.s32 %s13, 1
    %s19 = ssub.s32 %s13, 2
    %s20 = sadd.s32 %s13, 1
    %s21 = ssub.s32 %s13, %s20
    %p22 = scmp.eq.s32.totalorder %s21, 0
    %s24 = sadd.s32 %s23, 1
    %s25 = scalar_select %p22, %s23, %s24
    %p28 = pneg %p22
    %p29 = scmp.eq.s32.totalorder %s13, 1
    %p30 = por %p28, %p29
    %p31 = scmp.ne.s32.totalorder %s23, %s26
    %p32 = scmp.eq.s32.totalorder %s13, 0
    %p33 = por %p31, %p32
    %p34 = scmp.ne.s32.totalorder %s23, %s26
    %p35 = scmp.eq.s32.totalorder %s18, 1
    %p36 = por %p34, %p35
    %p37 = scmp.ne.s32.totalorder %s26, %s27
    %p38 = scmp.eq.s32.totalorder %s18, 0
    %p39 = por %p37, %p38
    %p40 = scmp.ne.s32.totalorder %s26, %s27
    %p41 = scmp.eq.s32.totalorder %s19, 1
    %p42 = por %p40, %p41
    %p44 = scmp.ne.s32.totalorder %s27, %s43
    %p45 = scmp.eq.s32.totalorder %s19, 0
    %p46 = por %p44, %p45
    %s47 = ssub.s32 %s13, %s20
    %p48 = scmp.eq.s32.totalorder %s47, 0
    %s50 = sadd.s32 %s49, 1
    %s51 = scalar_select %p48, %s49, %s50
    %p54 = pneg %p48
    %p55 = scmp.eq.s32.totalorder %s13, 1
    %p56 = por %p54, %p55
    %p57 = scmp.ne.s32.totalorder %s49, %s52
    %p58 = scmp.eq.s32.totalorder %s13, 0
    %p59 = por %p57, %p58
    %p60 = scmp.ne.s32.totalorder %s49, %s52
    %p61 = scmp.eq.s32.totalorder %s18, 1
    %p62 = por %p60, %p61
    %p63 = scmp.ne.s32.totalorder %s52, %s53
    %p64 = scmp.eq.s32.totalorder %s18, 0
    %p65 = por %p63, %p64
    %p66 = scmp.ne.s32.totalorder %s52, %s53
    %p67 = scmp.eq.s32.totalorder %s19, 1
    %p68 = por %p66, %p67
    %p70 = scmp.ne.s32.totalorder %s53, %s69
    %p71 = scmp.eq.s32.totalorder %s19, 0
    %p72 = por %p70, %p71
    %s73 = ssub.s32 %s13, %s20
    %p74 = scmp.eq.s32.totalorder %s73, 0
    %s76 = sadd.s32 %s75, 1
    %s77 = scalar_select %p74, %s75, %s76
    %p80 = pneg %p74
    %p81 = scmp.eq.s32.totalorder %s13, 1
    %p82 = por %p80, %p81
    %p83 = scmp.ne.s32.totalorder %s75, %s78
    %p84 = scmp.eq.s32.totalorder %s13, 0
    %p85 = por %p83, %p84
    %p86 = scmp.ne.s32.totalorder %s75, %s78
    %p87 = scmp.eq.s32.totalorder %s18, 1
    %p88 = por %p86, %p87
    %p89 = scmp.ne.s32.totalorder %s78, %s79
    %p90 = scmp.eq.s32.totalorder %s18, 0
    %p91 = por %p89, %p90
    %p92 = scmp.ne.s32.totalorder %s78, %s79
    %p93 = scmp.eq.s32.totalorder %s19, 1
    %p94 = por %p92, %p93
    %p96 = scmp.ne.s32.totalorder %s79, %s95
    %p97 = scmp.eq.s32.totalorder %s19, 0
    %p98 = por %p96, %p97
    %s99 = ssub.s32 %s13, %s20
    %p100 = scmp.eq.s32.totalorder %s99, 0
    %s102 = sadd.s32 %s101, 1
    %s103 = scalar_select %p100, %s101, %s102
    %p106 = pneg %p100
    %p107 = scmp.eq.s32.totalorder %s13, 1
    %p108 = por %p106, %p107
    %p109 = scmp.ne.s32.totalorder %s101, %s104
    %p110 = scmp.eq.s32.totalorder %s13, 0
    %p111 = por %p109, %p110
    %p112 = scmp.ne.s32.totalorder %s101, %s104
    %p113 = scmp.eq.s32.totalorder %s18, 1
    %p114 = por %p112, %p113
    %p115 = scmp.ne.s32.totalorder %s104, %s105
    %p116 = scmp.eq.s32.totalorder %s18, 0
    %p117 = por %p115, %p116
    %p118 = scmp.ne.s32.totalorder %s104, %s105
    %p119 = scmp.eq.s32.totalorder %s19, 1
    %p120 = por %p118, %p119
    %p122 = scmp.ne.s32.totalorder %s105, %s121
    %p123 = scmp.eq.s32.totalorder %s19, 0
    %p124 = por %p122, %p123
    %s125 = ssub.s32 %s13, %s20
    %p126 = scmp.eq.s32.totalorder %s125, 0
    %s128 = sadd.s32 %s127, 1
    %s129 = scalar_select %p126, %s127, %s128
    %p132 = pneg %p126
    %p133 = scmp.eq.s32.totalorder %s13, 1
    %p134 = por %p132, %p133
    %p135 = scmp.ne.s32.totalorder %s127, %s130
    %p136 = scmp.eq.s32.totalorder %s13, 0
    %p137 = por %p135, %p136
    %p138 = scmp.ne.s32.totalorder %s127, %s130
    %p139 = scmp.eq.s32.totalorder %s18, 1
    %p140 = por %p138, %p139
    %p141 = scmp.ne.s32.totalorder %s130, %s131
    %p142 = scmp.eq.s32.totalorder %s18, 0
    %p143 = por %p141, %p142
    %p144 = scmp.ne.s32.totalorder %s130, %s131
    %p145 = scmp.eq.s32.totalorder %s19, 1
    %p146 = por %p144, %p145
    %p148 = scmp.ne.s32.totalorder %s131, %s147
    %p149 = scmp.eq.s32.totalorder %s19, 0
    %p150 = por %p148, %p149
    %s151 = ssub.s32 %s13, %s20
    %p152 = scmp.eq.s32.totalorder %s151, 0
    %s154 = sadd.s32 %s153, 1
    %s155 = scalar_select %p152, %s153, %s154
    %p158 = pneg %p152
    %p159 = scmp.eq.s32.totalorder %s13, 1
    %p160 = por %p158, %p159
    %p161 = scmp.ne.s32.totalorder %s153, %s156
    %p162 = scmp.eq.s32.totalorder %s13, 0
    %p163 = por %p161, %p162
    %p164 = scmp.ne.s32.totalorder %s153, %s156
    %p165 = scmp.eq.s32.totalorder %s18, 1
    %p166 = por %p164, %p165
    %p167 = scmp.ne.s32.totalorder %s156, %s157
    %p168 = scmp.eq.s32.totalorder %s18, 0
    %p169 = por %p167, %p168
    %p170 = scmp.ne.s32.totalorder %s156, %s157
    %p171 = scmp.eq.s32.totalorder %s19, 1
    %p172 = por %p170, %p171
    %p174 = scmp.ne.s32.totalorder %s157, %s173
    %p175 = scmp.eq.s32.totalorder %s19, 0
    %p176 = por %p174, %p175
    %s177 = ssub.s32 %s13, %s20
    %p178 = scmp.eq.s32.totalorder %s177, 0
    %s180 = sadd.s32 %s179, 1
    %s181 = scalar_select %p178, %s179, %s180
    %p184 = pneg %p178
    %p185 = scmp.eq.s32.totalorder %s13, 1
    %p186 = por %p184, %p185
    %p187 = scmp.ne.s32.totalorder %s179, %s182
    %p188 = scmp.eq.s32.totalorder %s13, 0
    %p189 = por %p187, %p188
    %p190 = scmp.ne.s32.totalorder %s179, %s182
    %p191 = scmp.eq.s32.totalorder %s18, 1
    %p192 = por %p190, %p191
    %p193 = scmp.ne.s32.totalorder %s182, %s183
    %p194 = scmp.eq.s32.totalorder %s18, 0
    %p195 = por %p193, %p194
    %p196 = scmp.ne.s32.totalorder %s182, %s183
    %p197 = scmp.eq.s32.totalorder %s19, 1
    %p198 = por %p196, %p197
    %p200 = scmp.ne.s32.totalorder %s183, %s199
    %p201 = scmp.eq.s32.totalorder %s19, 0
    %p202 = por %p200, %p201
    %s203 = ssub.s32 %s13, %s20
    %p204 = scmp.eq.s32.totalorder %s203, 0
    %s206 = sadd.s32 %s205, 1
    %s207 = scalar_select %p204, %s205, %s206
    %p210 = pneg %p204
    %p211 = scmp.eq.s32.totalorder %s13, 1
    %p212 = por %p210, %p211
    %p213 = scmp.ne.s32.totalorder %s205, %s208
    %p214 = scmp.eq.s32.totalorder %s13, 0
    %p215 = por %p213, %p214
    %p216 = scmp.ne.s32.totalorder %s205, %s208
    %p217 = scmp.eq.s32.totalorder %s18, 1
    %p218 = por %p216, %p217
    %p219 = scmp.ne.s32.totalorder %s208, %s209
    %p220 = scmp.eq.s32.totalorder %s18, 0
    %p221 = por %p219, %p220
    %p222 = scmp.ne.s32.totalorder %s208, %s209
    %p223 = scmp.eq.s32.totalorder %s19, 1
    %p224 = por %p222, %p223
    %p226 = scmp.ne.s32.totalorder %s209, %s225
    %p227 = scmp.eq.s32.totalorder %s19, 0
    %p228 = por %p226, %p227
    %p229 = scmp.le.s32.totalorder 1, %s13
    %p230 = scmp.lt.s32.totalorder %s13, 3
    %p231 = pnand %p229, %p230
    %p232 = pneg %p231
    // Predicated region
    $region9: #{_clip_losses_stacked.1} parent=5 // pred_check
      _
    $region10: #{_clip_losses_stacked.1} parent=5 // pred_check_branch
      %234 = sbr.rel (%p231) target = $region12
    $region11: #{_clip_losses_stacked.1} parent=5 // pred_region
      %s235 = ssub.s32 %s13, 1
    $region12: #{_clip_losses_stacked.1} parent=5 // pred_fallthru
      _
    %p236 = scmp.lt.s32.totalorder %s13, 2
    // Predicated region
    $region13: #{_clip_losses_stacked.1} parent=5 // pred_check
      %p237 = pneg %p236
    $region14: #{_clip_losses_stacked.1} parent=5 // pred_check_branch
      %239 = sbr.rel (%p237) target = $region16
    $region15: #{_clip_losses_stacked.1} parent=5 // pred_region
      // Predicated region
      $region17: #{_clip_losses_stacked.1} parent=15 // pred_check
        %p240 = pneg %p33
      $region18: #{_clip_losses_stacked.1} parent=15 // pred_check_branch
        %242 = sbr.rel (%p240) target = $region20
      $region19: #{_clip_losses_stacked.1} parent=15 // pred_region
        %p243 = scmp.lt.s32.totalorder %s13, 1
        %s244 = scalar_select %p243, %s13, 1
        %s245 = smul.addr %s244, 2
        %s246 = scalar_lea.vmem %s0, %s245
      $region20: #{_clip_losses_stacked.1} parent=15 // pred_fallthru
        _
      // Predicated region
      $region21: #{_clip_losses_stacked.1} parent=15 // pred_check
        %p247 = pneg %p59
      $region22: #{_clip_losses_stacked.1} parent=15 // pred_check_branch
        %249 = sbr.rel (%p247) target = $region24
      $region23: #{_clip_losses_stacked.1} parent=15 // pred_region
        %p250 = scmp.lt.s32.totalorder %s13, 1
        %s251 = scalar_select %p250, %s13, 1
        %s252 = smul.addr %s251, 2
        %s253 = scalar_lea.vmem %s1, %s252
      $region24: #{_clip_losses_stacked.1} parent=15 // pred_fallthru
        _
      // Predicated region
      $region25: #{_clip_losses_stacked.1} parent=15 // pred_check
        %p254 = pneg %p85
      $region26: #{_clip_losses_stacked.1} parent=15 // pred_check_branch
        %256 = sbr.rel (%p254) target = $region28
      $region27: #{_clip_losses_stacked.1} parent=15 // pred_region
        %p257 = scmp.lt.s32.totalorder %s13, 1
        %s258 = scalar_select %p257, %s13, 1
        %s259 = smul.addr %s258, 4
        %s260 = scalar_lea.vmem %s2, %s259
      $region28: #{_clip_losses_stacked.1} parent=15 // pred_fallthru
        _
      // Predicated region
      $region29: #{_clip_losses_stacked.1} parent=15 // pred_check
        %p261 = pneg %p111
      $region30: #{_clip_losses_stacked.1} parent=15 // pred_check_branch
        %263 = sbr.rel (%p261) target = $region32
      $region31: #{_clip_losses_stacked.1} parent=15 // pred_region
        %p264 = scmp.lt.s32.totalorder %s13, 1
        %s265 = scalar_select %p264, %s13, 1
        %s266 = scalar_lea.vmem %s3, %s265
      $region32: #{_clip_losses_stacked.1} parent=15 // pred_fallthru
        _
      // Predicated region
      $region33: #{_clip_losses_stacked.1} parent=15 // pred_check
        %p267 = pneg %p137
      $region34: #{_clip_losses_stacked.1} parent=15 // pred_check_branch
        %269 = sbr.rel (%p267) target = $region36
      $region35: #{_clip_losses_stacked.1} parent=15 // pred_region
        %p270 = scmp.lt.s32.totalorder %s13, 1
        %s271 = scalar_select %p270, %s13, 1
        %s272 = smul.addr %s271, 4
        %s273 = scalar_lea.vmem %s4, %s272
      $region36: #{_clip_losses_stacked.1} parent=15 // pred_fallthru
        _
      // Predicated region
      $region37: #{_clip_losses_stacked.1} parent=15 // pred_check
        %p274 = pneg %p163
      $region38: #{_clip_losses_stacked.1} parent=15 // pred_check_branch
        %276 = sbr.rel (%p274) target = $region40
      $region39: #{_clip_losses_stacked.1} parent=15 // pred_region
        %p277 = scmp.lt.s32.totalorder %s13, 1
        %s278 = scalar_select %p277, %s13, 1
        %s279 = smul.addr %s278, 2
        %s280 = smul.addr %s279, 8
        %s281 = scalar_lea.vmem %s5, %s280
      $region40: #{_clip_losses_stacked.1} parent=15 // pred_fallthru
        _
      // Predicated region
      $region41: #{_clip_losses_stacked.1} parent=15 // pred_check
        %p282 = pneg %p189
      $region42: #{_clip_losses_stacked.1} parent=15 // pred_check_branch
        %284 = sbr.rel (%p282) target = $region44
      $region43: #{_clip_losses_stacked.1} parent=15 // pred_region
        %p285 = scmp.lt.s32.totalorder %s13, 1
        %s286 = scalar_select %p285, %s13, 1
        %s287 = smul.addr %s286, 16
        %s288 = smul.addr %s287, 8
        %s289 = scalar_lea.vmem %s6, %s288
      $region44: #{_clip_losses_stacked.1} parent=15 // pred_fallthru
        _
    $region16: #{_clip_losses_stacked.1} parent=5 // pred_fallthru
      _
    %p290 = scmp.le.s32.totalorder 1, %s13
    %p291 = scmp.lt.s32.totalorder %s13, 3
    %p292 = pnand %p290, %p291
    %p293 = pneg %p292
    // Predicated region
    $region45: #{_clip_losses_stacked.1} parent=5 // pred_check
      _
    $region46: #{_clip_losses_stacked.1} parent=5 // pred_check_branch
      %295 = sbr.rel (%p292) target = $region48
    $region47: #{_clip_losses_stacked.1} parent=5 // pred_region
      %s296 = ssub.s32 %s13, 1
      %p297 = scmp.lt.s32.totalorder %s18, 1
      %s298 = scalar_select %p297, %s18, 1
      %s299 = smul.addr %s298, 2
      %s300 = scalar_lea.vmem %s0, %s299
      %p301 = pneg %p39
      %p302 = pneg %p36
      %p303 = scmp.lt.s32.totalorder %s18, 1
      %s304 = scalar_select %p303, %s18, 1
      %s305 = smul.addr %s304, 2
      %s306 = scalar_lea.vmem %s1, %s305
      %p307 = pneg %p65
      %p308 = pneg %p62
      %p309 = scmp.lt.s32.totalorder %s18, 1
      %s310 = scalar_select %p309, %s18, 1
      %s311 = smul.addr %s310, 4
      %s312 = scalar_lea.vmem %s2, %s311
      %p313 = pneg %p91
      %p314 = pneg %p88
      %p315 = scmp.lt.s32.totalorder %s18, 1
      %s316 = scalar_select %p315, %s18, 1
      %s317 = scalar_lea.vmem %s3, %s316
      %p318 = pneg %p117
      %p319 = pneg %p114
      %p320 = scmp.lt.s32.totalorder %s18, 1
      %s321 = scalar_select %p320, %s18, 1
      %s322 = smul.addr %s321, 4
      %s323 = scalar_lea.vmem %s4, %s322
      %p324 = pneg %p143
      %p325 = pneg %p140
      %p326 = scmp.lt.s32.totalorder %s18, 1
      %s327 = scalar_select %p326, %s18, 1
      %s328 = smul.addr %s327, 2
      %s329 = smul.addr %s328, 8
      %s330 = scalar_lea.vmem %s5, %s329
      %p331 = pneg %p169
      %p332 = pneg %p166
      %p333 = scmp.lt.s32.totalorder %s18, 1
      %s334 = scalar_select %p333, %s18, 1
      %s335 = smul.addr %s334, 16
      %s336 = smul.addr %s335, 8
      %s337 = scalar_lea.vmem %s6, %s336
      %p338 = pneg %p195
      %p339 = pneg %p192
      %p340 = pneg %p221
      %p341 = pneg %p218
      %p342 = scmp.lt.s32.totalorder %s18, 1
      %s343 = scalar_select %p342, %s18, 1
      %s344 = smul.addr %s343, 8
      %s345 = scalar_lea.vmem %s7, %s344
      %p346 = scmp.lt.s32.totalorder %s18, 1
      %s347 = scalar_select %p346, %s18, 1
      %s348 = smul.addr %s347, 2
      %s349 = scalar_lea.vmem %s0, %s348
      %p350 = scmp.lt.s32.totalorder %s18, 1
      %s351 = scalar_select %p350, %s18, 1
      %s352 = smul.addr %s351, 2
      %s353 = scalar_lea.vmem %s1, %s352
      %p354 = scmp.lt.s32.totalorder %s18, 1
      %s355 = scalar_select %p354, %s18, 1
      %s356 = smul.addr %s355, 4
      %s357 = scalar_lea.vmem %s2, %s356
      %p358 = scmp.lt.s32.totalorder %s18, 1
      %s359 = scalar_select %p358, %s18, 1
      %s360 = scalar_lea.vmem %s3, %s359
      %p361 = scmp.lt.s32.totalorder %s18, 1
      %s362 = scalar_select %p361, %s18, 1
      %s363 = smul.addr %s362, 4
      %s364 = scalar_lea.vmem %s4, %s363
      %p365 = scmp.lt.s32.totalorder %s18, 1
      %s366 = scalar_select %p365, %s18, 1
      %s367 = smul.addr %s366, 2
      %s368 = smul.addr %s367, 8
      %s369 = scalar_lea.vmem %s5, %s368
      %p370 = scmp.lt.s32.totalorder %s18, 1
      %s371 = scalar_select %p370, %s18, 1
      %s372 = smul.addr %s371, 16
      %s373 = smul.addr %s372, 8
      %s374 = scalar_lea.vmem %s6, %s373
      %p375 = scmp.lt.s32.totalorder %s18, 1
      %s376 = scalar_select %p375, %s18, 1
      %s377 = smul.addr %s376, 8
      %s378 = scalar_lea.vmem %s7, %s377
      %v380 = vld [vmem:[%s349] sm:$0x3]
      %v381 = vld [vmem:[%s353] sm:$0x3]
      %v382 = vsub.f32 %v380, %v381
      %v383 = vld [vmem:[%s360] sm:$0x1]
      %v384 = vadd.f32 %v383, 0.0
      %v385 = vld [vmem:[%s364] sm:$0xf]
      %vm386 = vcmask 257024
      %v387 = vsel %vm386, %v385, 0.0
      %v388 = vrot.slane %v387, 4
      %v389 = vadd.f32 %v387, %v388
      %v390 = vrot.slane %v389, 2
      %v391 = vadd.f32 %v389, %v390
      %v392 = vrot.slane %v391, 1
      %v393 = vadd.f32 %v391, %v392
      %v394 = vrcp.pop 4.0
      %v395 = vmul.f32 %v393, %v394
      %v396 = vsub.f32 %v384, %v395
      %v398 = vlaneseq
      %v399 = vshrl.u32 %v398, 7
      %v400 = vsub.s32 0, %v399
      %v401 = vrot.slane %v396, %v400
      %v403 = vmul.f32 %v382, %v401
      %vm404 = vcmask 254976
      %v405 = vsel %vm404, %v403, 0.0
      %406 = vadd.xlane.f32.xlu0 %v405
      %v407 = vpop.xlane.xlu0 %406
      %v408 = vmul.f32 %v382, %v382
      %v409 = vsel %vm404, %v408, 0.0
      %410 = vadd.xlane.f32.xlu0 %v409
      %v411 = vpop.xlane.xlu0 %410
      %v412 = vmul.f32 %v396, %v396
      %vm413 = vcmask 253952
      %v414 = vsel %vm413, %v412, 0.0
      %415 = vadd.xlane.f32.xlu0 %v414
      %v416 = vpop.xlane.xlu0 %415
      %v417 = vmax.f32 %v411, 1e-16
      %v418 = vrsqrt.pop %v417
      %v419 = vmul.f32 %v407, %v418
      %v420 = vmax.f32 %v416, 1e-16
      %v421 = vrsqrt.pop %v420
      %v422 = vlaneseq
      %v423 = vshrl.u32 %v422, 7
      %v424 = vsub.s32 0, %v423
      %v425 = vrot.slane %v421, %v424
      %v426 = vmul.f32 %v419, %v425
      %vm427 = vcmask 1024
      %v428 = vsel %vm427, %v426, 0.0
      %429 = vadd.xlane.f32.xlu0 %v428
      %v430 = vpop.xlane.xlu0 %429
      %v431 = vrot.slane %v430, 4
      %v432 = vadd.f32 %v430, %v431
      %v433 = vrot.slane %v432, 2
      %v434 = vadd.f32 %v432, %v433
      %v435 = vrot.slane %v434, 1
      %v436 = vadd.f32 %v434, %v435
      %s437 = vtos %v436
      %v438 = vrcp.pop 2.0
      %s439 = vtos %v438
      %s440 = smul.f32 %s437, %s439
      %s441 = ssub.f32 1.0, %s440
      %v442 = vld [vmem:[%s357] sm:$0xf]
      %v443 = vpack.c.bf16 %v442, %v442
      %vm444 = vcmask 261120
      %v446 = vsel %vm444, %v443, 0
      %448 = vmatprep.subr.bf16.mxu0 0
      %449 = vmatpush1.bf16.xpose.msra.mxu0 %v446
      %450 = vmatprep.subr.bf16.mxu0 0
      %451 = vmatpush1.bf16.xpose.msra.mxu0 0
      %452 = vmatprep.subr.bf16.mxu0 0
      %453 = vmatpush1.bf16.xpose.msra.mxu0 0
      %454 = vmatprep.subr.bf16.mxu0 0
      %455 = vmatpush1.bf16.xpose.msra.mxu0 0
      %456 = vmatprep.subr.bf16.mxu0 0
      %457 = vmatpush1.bf16.xpose.msra.mxu0 0
      %458 = vmatprep.subr.bf16.mxu0 0
      %459 = vmatpush1.bf16.xpose.msra.mxu0 0
      %460 = vmatprep.subr.bf16.mxu0 0
      %461 = vmatpush1.bf16.xpose.msra.mxu0 0
      %462 = vmatprep.subr.bf16.mxu0 0
      %463 = vmatpush1.bf16.xpose.msra.mxu0 0
      %464 = vmatprep.subr.bf16.mxu0 0
      %465 = vmatpush1.bf16.xpose.msra.mxu0 0
      %466 = vmatprep.subr.bf16.mxu0 0
      %467 = vmatpush1.bf16.xpose.msra.mxu0 0
      %468 = vmatprep.subr.bf16.mxu0 0
      %469 = vmatpush1.bf16.xpose.msra.mxu0 0
      %470 = vmatprep.subr.bf16.mxu0 0
      %471 = vmatpush1.bf16.xpose.msra.mxu0 0
      %472 = vmatprep.subr.bf16.mxu0 0
      %473 = vmatpush1.bf16.xpose.msra.mxu0 0
      %474 = vmatprep.subr.bf16.mxu0 0
      %475 = vmatpush1.bf16.xpose.msra.mxu0 0
      %476 = vmatprep.subr.bf16.mxu0 0
      %477 = vmatpush1.bf16.xpose.msra.mxu0 0
      %478 = vmatprep.subr.bf16.mxu0 0
      %479 = vmatpush1.bf16.xpose.msra.mxu0 0
      %480 = vmatprep.mubr.bf16.mxu0 0
      %481 = vmatmul.mubr.bf16.gmra.mrb[0].mxu0 %v446
      %v482 = vpop.f32.mrb[0].mxu0
      %v483 = vadd.f32 0.0, %v482
      %v484 = vpop.f32.mrb[0].mxu0
      %v485 = vpop.f32.mrb[0].mxu0
      %v486 = vpop.f32.mrb[0].mxu0
      %487 = vdwg.mxu0
      %v489 = vrot.slane %v483, 2
      %490 = vrot.lane.b32.xlu0 %v489, 126
      %v491 = vpop.permute.xlu0 %490
      %v493 = vsub.f32 %v483, %v491
      %v494 = vand.u32 2147483647, %v493
      %vm495 = vcmask 9216
      %v496 = vsel %vm495, %v494, 0.0
      %497 = vadd.xlane.f32.xlu0 %v496
      %v498 = vpop.xlane.xlu0 %497
      %v499 = vrot.slane %v498, 4
      %v500 = vadd.f32 %v498, %v499
      %v501 = vrot.slane %v500, 2
      %v502 = vadd.f32 %v500, %v501
      %v503 = vrot.slane %v502, 1
      %v504 = vadd.f32 %v502, %v503
      %s505 = vtos %v504
      %v506 = vrcp.pop 4.0
      %s507 = vtos %v506
      %s508 = smul.f32 %s505, %s507
      %v509 = vld [vmem:[%s369] sm:$0xff]
      %v510 = vld [vmem:[%s369 + $0x8] sm:$0xff]
      %v511 = vld [vmem:[%s374] sm:$0xff]
      %v512 = vld [vmem:[%s374 + $0x8] sm:$0xff]
      %v513 = vld [vmem:[%s374 + $0x10] sm:$0xff]
      %v514 = vld [vmem:[%s374 + $0x18] sm:$0xff]
      %v515 = vld [vmem:[%s374 + $0x20] sm:$0xff]
      %v516 = vld [vmem:[%s374 + $0x28] sm:$0xff]
      %v517 = vld [vmem:[%s374 + $0x30] sm:$0xff]
      %v518 = vld [vmem:[%s374 + $0x38] sm:$0xff]
      %v519 = vld [vmem:[%s374 + $0x40] sm:$0xff]
      %v520 = vld [vmem:[%s374 + $0x48] sm:$0xff]
      %v521 = vld [vmem:[%s374 + $0x50] sm:$0xff]
      %v522 = vld [vmem:[%s374 + $0x58] sm:$0xff]
      %v523 = vld [vmem:[%s374 + $0x60] sm:$0xff]
      %v524 = vld [vmem:[%s374 + $0x68] sm:$0xff]
      %v525 = vld [vmem:[%s374 + $0x70] sm:$0xff]
      %v526 = vld [vmem:[%s374 + $0x78] sm:$0xff]
      %v527 = vmul.f32 %v509, %v509
      %v528 = vmul.f32 %v510, %v510
      %v529 = vsel %vm444, %v527, 0.0
      %530 = vadd.xlane.f32.xlu0 %v529
      %v531 = vpop.xlane.xlu0 %530
      %v532 = vsel %vm444, %v528, 0.0
      %533 = vadd.xlane.f32.xlu0 %v532
      %v534 = vpop.xlane.xlu0 %533
      %v535 = vmax.f32 %v531, 1e-12
      %v536 = vmax.f32 %v534, 1e-12
      %v537 = vrsqrt.pop %v535
      %v538 = vrsqrt.pop %v536
      %v539 = vmul.f32 %v509, %v537
      %v540 = vmul.f32 %v510, %v538
      %v541 = vpack.c.bf16 %v539, %v539
      %v542 = vpack.c.bf16 %v540, %v540
      %v543 = vmul.f32 %v511, %v511
      %v544 = vmul.f32 %v512, %v512
      %v545 = vmul.f32 %v513, %v513
      %v546 = vmul.f32 %v514, %v514
      %v547 = vmul.f32 %v515, %v515
      %v548 = vmul.f32 %v516, %v516
      %v549 = vmul.f32 %v517, %v517
      %v550 = vmul.f32 %v518, %v518
      %v551 = vmul.f32 %v519, %v519
      %v552 = vmul.f32 %v520, %v520
      %v553 = vmul.f32 %v521, %v521
      %v554 = vmul.f32 %v522, %v522
      %v555 = vmul.f32 %v523, %v523
      %v556 = vmul.f32 %v524, %v524
      %v557 = vmul.f32 %v525, %v525
      %v558 = vmul.f32 %v526, %v526
      %v559 = vsel %vm444, %v543, 0.0
      %560 = vadd.xlane.f32.xlu0 %v559
      %v561 = vpop.xlane.xlu0 %560
      %v562 = vsel %vm444, %v544, 0.0
      %563 = vadd.xlane.f32.xlu0 %v562
      %v564 = vpop.xlane.xlu0 %563
      %v565 = vsel %vm444, %v545, 0.0
      %566 = vadd.xlane.f32.xlu0 %v565
      %v567 = vpop.xlane.xlu0 %566
      %v568 = vsel %vm444, %v546, 0.0
      %569 = vadd.xlane.f32.xlu0 %v568
      %v570 = vpop.xlane.xlu0 %569
      %v571 = vsel %vm444, %v547, 0.0
      %572 = vadd.xlane.f32.xlu0 %v571
      %v573 = vpop.xlane.xlu0 %572
      %v574 = vsel %vm444, %v548, 0.0
      %575 = vadd.xlane.f32.xlu0 %v574
      %v576 = vpop.xlane.xlu0 %575
      %v577 = vsel %vm444, %v549, 0.0
      %578 = vadd.xlane.f32.xlu0 %v577
      %v579 = vpop.xlane.xlu0 %578
      %v580 = vsel %vm444, %v550, 0.0
      %581 = vadd.xlane.f32.xlu0 %v580
      %v582 = vpop.xlane.xlu0 %581
      %v583 = vsel %vm444, %v551, 0.0
      %584 = vadd.xlane.f32.xlu0 %v583
      %v585 = vpop.xlane.xlu0 %584
      %v586 = vsel %vm444, %v552, 0.0
      %587 = vadd.xlane.f32.xlu0 %v586
      %v588 = vpop.xlane.xlu0 %587
      %v589 = vsel %vm444, %v553, 0.0
      %590 = vadd.xlane.f32.xlu0 %v589
      %v591 = vpop.xlane.xlu0 %590
      %v592 = vsel %vm444, %v554, 0.0
      %593 = vadd.xlane.f32.xlu0 %v592
      %v594 = vpop.xlane.xlu0 %593
      %v595 = vsel %vm444, %v555, 0.0
      %596 = vadd.xlane.f32.xlu0 %v595
      %v597 = vpop.xlane.xlu0 %596
      %v598 = vsel %vm444, %v556, 0.0
      %599 = vadd.xlane.f32.xlu0 %v598
      %v600 = vpop.xlane.xlu0 %599
      %v601 = vsel %vm444, %v557, 0.0
      %602 = vadd.xlane.f32.xlu0 %v601
      %v603 = vpop.xlane.xlu0 %602
      %v604 = vsel %vm444, %v558, 0.0
      %605 = vadd.xlane.f32.xlu0 %v604
      %v606 = vpop.xlane.xlu0 %605
      %v607 = vmax.f32 %v561, 1e-12
      %v608 = vmax.f32 %v564, 1e-12
      %v609 = vmax.f32 %v567, 1e-12
      %v610 = vmax.f32 %v570, 1e-12
      %v611 = vmax.f32 %v573, 1e-12
      %v612 = vmax.f32 %v576, 1e-12
      %v613 = vmax.f32 %v579, 1e-12
      %v614 = vmax.f32 %v582, 1e-12
      %v615 = vmax.f32 %v585, 1e-12
      %v616 = vmax.f32 %v588, 1e-12
      %v617 = vmax.f32 %v591, 1e-12
      %v618 = vmax.f32 %v594, 1e-12
      %v619 = vmax.f32 %v597, 1e-12
      %v620 = vmax.f32 %v600, 1e-12
      %v621 = vmax.f32 %v603, 1e-12
      %v622 = vmax.f32 %v606, 1e-12
      %v623 = vrsqrt.pop %v607
      %v624 = vrsqrt.pop %v608
      %v625 = vrsqrt.pop %v609
      %v626 = vrsqrt.pop %v610
      %v627 = vrsqrt.pop %v611
      %v628 = vrsqrt.pop %v612
      %v629 = vrsqrt.pop %v613
      %v630 = vrsqrt.pop %v614
      %v631 = vrsqrt.pop %v615
      %v632 = vrsqrt.pop %v616
      %v633 = vrsqrt.pop %v617
      %v634 = vrsqrt.pop %v618
      %v635 = vrsqrt.pop %v619
      %v636 = vrsqrt.pop %v620
      %v637 = vrsqrt.pop %v621
      %v638 = vrsqrt.pop %v622
      %v639 = vmul.f32 %v511, %v623
      %v640 = vmul.f32 %v512, %v624
      %v641 = vmul.f32 %v513, %v625
      %v642 = vmul.f32 %v514, %v626
      %v643 = vmul.f32 %v515, %v627
      %v644 = vmul.f32 %v516, %v628
      %v645 = vmul.f32 %v517, %v629
      %v646 = vmul.f32 %v518, %v630
      %v647 = vmul.f32 %v519, %v631
      %v648 = vmul.f32 %v520, %v632
      %v649 = vmul.f32 %v521, %v633
      %v650 = vmul.f32 %v522, %v634
      %v651 = vmul.f32 %v523, %v635
      %v652 = vmul.f32 %v524, %v636
      %v653 = vmul.f32 %v525, %v637
      %v654 = vmul.f32 %v526, %v638
      %v655 = vpack.c.bf16 %v640, %v639
      %v656 = vpack.c.bf16 %v642, %v641
      %v657 = vpack.c.bf16 %v644, %v643
      %v658 = vpack.c.bf16 %v646, %v645
      %v659 = vpack.c.bf16 %v648, %v647
      %v660 = vpack.c.bf16 %v650, %v649
      %v661 = vpack.c.bf16 %v652, %v651
      %v662 = vpack.c.bf16 %v654, %v653
      %v665 = vunpack.c.l.b16 %v541
      %v666 = vunpack.c.l.b16 %v542
      %v667 = vpack.c.b16 %v666, %v665
      %v669 = vsel %vm444, %v667, 0
      %v672 = vsel %vm444, %v655, 0
      %v675 = vsel %vm444, %v656, 0
      %v678 = vsel %vm444, %v657, 0
      %v681 = vsel %vm444, %v658, 0
      %v684 = vsel %vm444, %v659, 0
      %v687 = vsel %vm444, %v660, 0
      %v690 = vsel %vm444, %v661, 0
      %v693 = vsel %vm444, %v662, 0
      %695 = vmatprep.subr.bf16.mxu0 0
      %696 = vmatpush1.bf16.xpose.msra.mxu0 %v672
      %697 = vmatprep.subr.bf16.mxu0 0
      %698 = vmatpush1.bf16.xpose.msra.mxu0 %v675
      %699 = vmatprep.subr.bf16.mxu0 0
      %700 = vmatpush1.bf16.xpose.msra.mxu0 %v678
      %701 = vmatprep.subr.bf16.mxu0 0
      %702 = vmatpush1.bf16.xpose.msra.mxu0 %v681
      %703 = vmatprep.subr.bf16.mxu0 0
      %704 = vmatpush1.bf16.xpose.msra.mxu0 %v684
      %705 = vmatprep.subr.bf16.mxu0 0
      %706 = vmatpush1.bf16.xpose.msra.mxu0 %v687
      %707 = vmatprep.subr.bf16.mxu0 0
      %708 = vmatpush1.bf16.xpose.msra.mxu0 %v690
      %709 = vmatprep.subr.bf16.mxu0 0
      %710 = vmatpush1.bf16.xpose.msra.mxu0 %v693
      %711 = vmatprep.subr.bf16.mxu0 0
      %712 = vmatpush1.bf16.xpose.msra.mxu0 0
      %713 = vmatprep.subr.bf16.mxu0 0
      %714 = vmatpush1.bf16.xpose.msra.mxu0 0
      %715 = vmatprep.subr.bf16.mxu0 0
      %716 = vmatpush1.bf16.xpose.msra.mxu0 0
      %717 = vmatprep.subr.bf16.mxu0 0
      %718 = vmatpush1.bf16.xpose.msra.mxu0 0
      %719 = vmatprep.subr.bf16.mxu0 0
      %720 = vmatpush1.bf16.xpose.msra.mxu0 0
      %721 = vmatprep.subr.bf16.mxu0 0
      %722 = vmatpush1.bf16.xpose.msra.mxu0 0
      %723 = vmatprep.subr.bf16.mxu0 0
      %724 = vmatpush1.bf16.xpose.msra.mxu0 0
      %725 = vmatprep.subr.bf16.mxu0 0
      %726 = vmatpush1.bf16.xpose.msra.mxu0 0
      %727 = vmatprep.mubr.bf16.mxu0 0
      %728 = vmatmul.mubr.bf16.gmra.mrb[0].mxu0 %v669
      %v729 = vpop.f32.mrb[0].mxu0
      %v730 = vadd.f32 0.0, %v729
      %v731 = vpop.f32.mrb[0].mxu0
      %v732 = vpop.f32.mrb[0].mxu0
      %v733 = vadd.f32 0.0, %v732
      %v734 = vpop.f32.mrb[0].mxu0
      %735 = vdwg.mxu0
      %v736 = vlaneseq
      %v737 = vand.u32 %v736, 127
      %vm738 = vcmp.lt.s32.totalorder %v737, 8
      %v739 = vsel %vm738, %v730, -inf
      %v740 = vsel %vm738, %v733, -inf
      %741 = vmax.xlane.f32.xlu0 %v739
      %v742 = vpop.xlane.xlu0 %741
      %743 = vmax.xlane.f32.xlu0 %v740
      %v744 = vpop.xlane.xlu0 %743
      %v747 = vlaneseq
      %v748 = vshrl.u32 %v747, 7
      %v749 = vsub.s32 %v737, %v748
      %v750 = vrot.slane %v742, %v749
      %v751 = vlaneseq
      %v752 = vshrl.u32 %v751, 7
      %v753 = vsub.s32 %v737, %v752
      %v754 = vrot.slane %v744, %v753
      %vm755 = vcmask 1041409
      %v756 = vsel %vm755, %v754, %v750
      %vm758 = vcmask 58368
      %v759 = vsel %vm758, %v756, 0.0
      %760 = vadd.xlane.f32.xlu0 %v759
      %v761 = vpop.xlane.xlu0 %760
      %v762 = vrcp.pop 8.0
      %v763 = vmul.f32 %v761, %v762
      %v764 = vrot.slane %v739, 4
      %v765 = vmax.f32 %v739, %v764
      %v766 = vrot.slane %v765, 2
      %v767 = vmax.f32 %v765, %v766
      %v768 = vrot.slane %v767, 1
      %v769 = vmax.f32 %v767, %v768
      %v770 = vrot.slane %v740, 4
      %v771 = vmax.f32 %v740, %v770
      %v772 = vrot.slane %v771, 2
      %v773 = vmax.f32 %v771, %v772
      %v774 = vrot.slane %v773, 1
      %v775 = vmax.f32 %v773, %v774
      %v778 = vsel %vm755, %v775, %v769
      %v780 = vsel %vm738, %v778, 0.0
      %vm781 = vcmask 1041408
      %v782 = vsel %vm781, %v780, 0.0
      %783 = vadd.xlane.f32.xlu0 %v782
      %v784 = vpop.xlane.xlu0 %783
      %v785 = vmul.f32 %v784, 0.125
      %v786 = vmin.f32 %v763, %v785
      %v787 = vsub.f32 1.0, %v786
      %v788 = vsel %vm427, %v787, 0.0
      %789 = vadd.xlane.f32.xlu0 %v788
      %v790 = vpop.xlane.xlu0 %789
      %v791 = vrot.slane %v790, 4
      %v792 = vadd.f32 %v790, %v791
      %v793 = vrot.slane %v792, 2
      %v794 = vadd.f32 %v792, %v793
      %v795 = vrot.slane %v794, 1
      %v796 = vadd.f32 %v794, %v795
      %s797 = vtos %v796
      %v798 = vrcp.pop 2.0
      %s799 = vtos %v798
      %s800 = smul.f32 %s797, %s799
      %v801 = vlaneseq
      %v802 = vshrl.u32 %v801, 7
      %vm803 = vcmp.eq.s32.totalorder %v802, 0
      %vm804 = vcmp.eq.s32.totalorder %v737, 0
      %vm805 = vmand %vm803, %vm804
      %vm806 = vcmp.eq.s32.totalorder %v737, 1
      %vm807 = vmand %vm803, %vm806
      %vm808 = vcmp.eq.s32.totalorder %v737, 2
      %vm809 = vmand %vm803, %vm808
      %v810 = vstv %s800
      %v811 = vsel %vm809, %v810, 0.0
      %v812 = vstv %s508
      %v813 = vsel %vm807, %v812, %v811
      %v814 = vstv %s441
      %v815 = vsel %vm805, %v814, %v813
      %816 = vst [vmem:[%s378] sm:$0xff] %v815
      %p817 = scmp.lt.s32.totalorder %s18, 1
      %s818 = scalar_select %p817, %s18, 1
      %s819 = smul.addr %s818, 8
      %s820 = scalar_lea.vmem %s7, %s819
      // Predicated region
      $region49: #{_clip_losses_stacked.1} parent=47 // pred_check
        %p821 = pneg %p218
      $region50: #{_clip_losses_stacked.1} parent=47 // pred_check_branch
        %823 = sbr.rel (%p821) target = $region52
      $region51: #{_clip_losses_stacked.1} parent=47 // pred_region
        _
      $region52: #{_clip_losses_stacked.1} parent=47 // pred_fallthru
        _
    $region48: #{_clip_losses_stacked.1} parent=5 // pred_fallthru
      _
    %p824 = scmp.le.s32.totalorder 2, %s13
    // Predicated region
    $region53: #{_clip_losses_stacked.1} parent=5 // pred_check
      %p825 = pneg %p824
    $region54: #{_clip_losses_stacked.1} parent=5 // pred_check_branch
      %827 = sbr.rel (%p825) target = $region56
    $region55: #{_clip_losses_stacked.1} parent=5 // pred_region
      %s828 = ssub.s32 %s13, 2
      // Predicated region
      $region57: #{_clip_losses_stacked.1} parent=55 // pred_check
        %p829 = pneg %p224
      $region58: #{_clip_losses_stacked.1} parent=55 // pred_check_branch
        %831 = sbr.rel (%p829) target = $region60
      $region59: #{_clip_losses_stacked.1} parent=55 // pred_region
        %p832 = scmp.lt.s32.totalorder %s19, 1
        %s833 = scalar_select %p832, %s19, 1
        %s834 = smul.addr %s833, 8
        %s835 = scalar_lea.vmem %s7, %s834
      $region60: #{_clip_losses_stacked.1} parent=55 // pred_fallthru
        _
    $region56: #{_clip_losses_stacked.1} parent=5 // pred_fallthru
      _
  $region6: #{_clip_losses_stacked.1} parent=0 // loop_footer
    %s17 = sadd.s32 1, %s13
  $region7: #{_clip_losses_stacked.1} parent=0 // loop_footer_branch
    %12 = sbr.rel target = $region3
  $region8: #{_clip_losses_stacked.1} parent=0 // loop_exit
    _

</llo_original>
